<compile_context>
chip_gen: v7x
topology: tpu7x:2x2x1
jax: 0.10.0
libtpu: 0.0.40
codegen_flags: <defaults>
</compile_context>

<pallas_src>
import functools

import jax
import jax.numpy as jnp
from jax.experimental import pallas as pl
from jax.experimental.pallas import tpu as pltpu

EPS = 1e-8
_MIB = 1024 * 1024


def _round_up(x, m):
    return (x + m - 1) // m * m


def _tpu_caps():
    """(vmem_capacity_bytes, tensorcores_per_chip) with safe fallbacks."""
    vmem = 128 * _MIB
    cores = 1
    try:
        info = pltpu.get_tpu_info()
        v = getattr(info, "vmem_capacity_bytes", None)
        if isinstance(v, int) and v > 0:
            vmem = v
        for name in ("num_cores", "tensorcores_per_chip", "cores_per_chip"):
            c = getattr(info, name, None)
            if isinstance(c, int) and c > 0:
                cores = c
                break
    except Exception:
        pass
    return vmem, cores


def _encoder_kernel(x_ref, uv_ref, w_ref, nc_ref, *, n_pad, matmul_dtype):
    # x_ref: (tm, L)   uv_ref: (L, 2*n_pad)   w_ref: (tm, n_pad)   nc_ref: (tm, 1)
    x = x_ref[...].astype(jnp.float32)

    # L2 norm over the feature (lane) axis in f32, keepdim.
    norm = jnp.sqrt(jnp.sum(x * x, axis=-1, keepdims=True))

    # EUP reciprocal + cheap VPU broadcast-multiply instead of a divide.
    inv = pl.reciprocal(norm + EPS, approx=False)
    xn = x * inv

    # Fused kernel_size=1 Conv1d_U / Conv1d_V: a single MXU pass over the
    # concatenated [L, 2*n_pad] weight slab; accumulation stays f32.
    y = jnp.dot(xn.astype(matmul_dtype), uv_ref[...],
                preferred_element_type=jnp.float32)

    conv = jnp.maximum(y[:, :n_pad], 0.0)                 # relu     (VPU)
    # sigmoid(t) == 0.5 * (tanh(t / 2) + 1): one EUP push per element.
    gate = 0.5 * (jnp.tanh(0.5 * y[:, n_pad:]) + 1.0)     # sigmoid  (EUP)

    w_ref[...] = (conv * gate).astype(w_ref.dtype)
    nc_ref[...] = norm.astype(nc_ref.dtype)


def encoder_forward(mixture, weight_u, weight_v, *, matmul_dtype=jnp.bfloat16,
                    out_dtype=None, tm=None):
    """mixture: [B, K, L]; weight_u / weight_v: [N, L] (PyTorch Conv1d weight
    layout with the size-1 kernel dim squeezed).

    Returns (mixture_w [B, K, N], norm_coef [B, K, 1]).
    """
    B, K, L = mixture.shape
    N = weight_u.shape[0]
    M = B * K
    if out_dtype is None:
        out_dtype = mixture.dtype

    # Pad each conv's filter axis independently to a lane-dense multiple of 128
    # so in-kernel slices are lane-aligned and the mixture_w store is unmasked.
    n_pad = _round_up(N, 128)
    u_t, v_t = weight_u.T, weight_v.T                      # [L, N] each
    if n_pad != N:
        padc = ((0, 0), (0, n_pad - N))
        u_t = jnp.pad(u_t, padc)
        v_t = jnp.pad(v_t, padc)
    uv_t = jnp.concatenate([u_t, v_t], axis=1).astype(matmul_dtype)  # [L, 2*n_pad]

    in_b = jnp.dtype(mixture.dtype).itemsize
    out_b = jnp.dtype(out_dtype).itemsize
    w_b = jnp.dtype(matmul_dtype).itemsize

    vmem_cap, num_cores = _tpu_caps()
    vmem_budget = min(int(vmem_cap * 0.6), 64 * _MIB)      # generation-aware cap

    # VMEM working set: double-buffered weight slab + per-row (double-buffered
    # in/out tiles + f32 intermediates xn and the [., 2*n_pad] pre-activation).
    weight_vmem = 2 * L * (2 * n_pad) * w_b
    row_vmem = 2 * (L * in_b + (n_pad + 1) * out_b) + (L + 2 * n_pad) * 4
    tm_vmem_max = max(8, (vmem_budget - weight_vmem) // row_vmem)

    # Per-step HBM traffic target (~4 MiB) so the ~0.35 us/step overhead is
    # amortized and the kernel sits on the bandwidth roofline.
    hbm_per_row = L * in_b + (n_pad + 1) * out_b
    tm_traffic = _round_up(pl.cdiv(4 * _MIB, hbm_per_row), 8)

    if tm is None:
        tm = min(tm_traffic, tm_vmem_max)
    tm = min(tm, _round_up(M, 8))
    if num_cores > 1 and M > 8:
        # Keep >= num_cores "parallel" grid steps so v7x's two TensorCores can
        # each take a share; skipped on single-TC chips (v5e/v6e).
        tm = min(tm, _round_up(pl.cdiv(M, num_cores), 8))
    tm = max(8, (tm // 8) * 8)

    grid = (pl.cdiv(M, tm),)

    working_set = weight_vmem + tm * row_vmem
    vmem_limit = int(min(max(32 * _MIB, working_set * 5 // 4 + 2 * _MIB),
                         int(vmem_cap * 0.75)))

    # No padding of the row axis: Pallas masks the ragged last block (reads of
    # the out-of-range tail are garbage but rows are independent and their
    # stores are dropped).
    x2d = mixture.reshape(M, L)

    kernel = functools.partial(_encoder_kernel, n_pad=n_pad,
                               matmul_dtype=matmul_dtype)

    mixture_w, norm_coef = pl.pallas_call(
        kernel,
        out_shape=(
            jax.ShapeDtypeStruct((M, n_pad), out_dtype),
            jax.ShapeDtypeStruct((M, 1), mixture.dtype),
        ),
        grid_spec=pltpu.PrefetchScalarGridSpec(
            num_scalar_prefetch=0,
            grid=grid,
            in_specs=[
                pl.BlockSpec((tm, L), lambda i: (i, 0)),
                pl.BlockSpec((L, 2 * n_pad), lambda i: (0, 0)),
            ],
            out_specs=[
                pl.BlockSpec((tm, n_pad), lambda i: (i, 0)),
                pl.BlockSpec((tm, 1), lambda i: (i, 0)),
            ],
        ),
        compiler_params=pltpu.CompilerParams(
            dimension_semantics=("parallel",),
            vmem_limit_bytes=vmem_limit,
        ),
    )(x2d, uv_t)

    if n_pad != N:
        mixture_w = mixture_w[:, :N]   # strip lane padding (tiny, review-approved)
    return mixture_w.reshape(B, K, N), norm_coef.reshape(B, K, 1)


def _reference(mixture, weight_u, weight_v):
    mixture = mixture.astype(jnp.float32)
    norm = jnp.sqrt(jnp.sum(mixture * mixture, axis=-1, keepdims=True))
    xn = mixture / (norm + EPS)
    conv = jnp.maximum(jnp.einsum("bkl,nl->bkn", xn, weight_u), 0.0)
    gate = jax.nn.sigmoid(jnp.einsum("bkl,nl->bkn", xn, weight_v))
    return conv * gate, norm


if __name__ == "__main__":
    key = jax.random.PRNGKey(0)
    k_x, k_u, k_v, k_x2 = jax.random.split(key, 4)

    # Small shapes: B=2, K=8 segments, L=16 samples per segment, N=32 filters.
    B, K, L, N = 2, 8, 16, 32
    mixture = jax.random.normal(k_x, (B, K, L), dtype=jnp.float32)
    weight_u = jax.random.normal(k_u, (N, L), dtype=jnp.float32) * 0.1
    weight_v = jax.random.normal(k_v, (N, L), dtype=jnp.float32) * 0.1

    ref_w, ref_norm = _reference(mixture, weight_u, weight_v)

    # 1) Default path: bf16 MXU inputs, f32 accumulation / activations / norm.
    mixture_w, norm_coef = encoder_forward(mixture, weight_u, weight_v)
    jax.block_until_ready((mixture_w, norm_coef))
    assert mixture_w.shape == (B, K, N) and norm_coef.shape == (B, K, 1)
    assert jnp.allclose(mixture_w, ref_w, atol=2e-2, rtol=2e-2)
    assert jnp.allclose(norm_coef, ref_norm, atol=1e-5, rtol=1e-5)

    # 2) Forced f32 matmul path: bit-tight vs the reference.
    w_f32, nc_f32 = encoder_forward(mixture, weight_u, weight_v,
                                    matmul_dtype=jnp.float32)
    jax.block_until_ready((w_f32, nc_f32))
    assert jnp.allclose(w_f32, ref_w, atol=1e-4, rtol=1e-4)
    assert jnp.allclose(nc_f32, ref_norm, atol=1e-5, rtol=1e-5)

    # 3) Ragged rows (B*K not a multiple of the tile / of 8) -> masked tail block.
    B2, K2 = 3, 5
    mixture2 = jax.random.normal(k_x2, (B2, K2, L), dtype=jnp.float32)
    w2, nc2 = encoder_forward(mixture2, weight_u, weight_v)
    jax.block_until_ready((w2, nc2))
    ref_w2, ref_norm2 = _reference(mixture2, weight_u, weight_v)
    assert w2.shape == (B2, K2, N) and nc2.shape == (B2, K2, 1)
    assert jnp.allclose(w2, ref_w2, atol=2e-2, rtol=2e-2)
    assert jnp.allclose(nc2, ref_norm2, atol=1e-5, rtol=1e-5)

    # 4) bf16 HBM I/O path (bandwidth win on v5e/v6e/v7x); loose tolerance.
    mixture_bf = mixture.astype(jnp.bfloat16)
    w_bf, nc_bf = encoder_forward(mixture_bf, weight_u, weight_v)
    jax.block_until_ready((w_bf, nc_bf))
    ref_w_bf, ref_norm_bf = _reference(mixture_bf, weight_u, weight_v)
    assert w_bf.dtype == jnp.bfloat16 and nc_bf.dtype == jnp.bfloat16
    assert jnp.allclose(w_bf.astype(jnp.float32), ref_w_bf, atol=5e-2, rtol=5e-2)
    assert jnp.allclose(nc_bf.astype(jnp.float32), ref_norm_bf, atol=5e-2, rtol=5e-2)

    print("KERNEL_OK")
</pallas_src>

<mosaic_0001>
module attributes {stable_mosaic.version = 11 : i64} {
  func.func @_encoder_kernel(%arg0: i32, %arg1: memref<16x16xf32, #tpu.memory_space<vmem>>, %arg2: memref<16x256xbf16, #tpu.memory_space<vmem>>, %arg3: memref<16x128xf32, #tpu.memory_space<vmem>>, %arg4: memref<16x1xf32, #tpu.memory_space<vmem>>) attributes {dimension_semantics = [#tpu.dimension_semantics<parallel>], iteration_bounds = array<i64: 1>, scalar_prefetch = 0 : i64, scratch_operands = 0 : i64, tpu.core_type = #tpu.core_type<tc>, window_params = [{transform_indices = @transform_0, window_bounds = array<i64: 16, 16>}, {pipeline_mode = #tpu.pipeline_mode<synchronous>, transform_indices = @transform_1, window_bounds = array<i64: 16, 256>}, {transform_indices = @transform_2, window_bounds = array<i64: 16, 128>}, {transform_indices = @transform_3, window_bounds = array<i64: 16, 1>}]} {
    %c0 = arith.constant 0 : index
    %c0_0 = arith.constant 0 : index
    %0 = vector.load %arg1[%c0, %c0_0] : memref<16x16xf32, #tpu.memory_space<vmem>>, vector<16x16xf32>
    %1 = arith.mulf %0, %0 : vector<16x16xf32>
    %cst = arith.constant dense<0.000000e+00> : vector<16xf32>
    %2 = vector.multi_reduction <add>, %1, %cst [1] : vector<16x16xf32> to vector<16xf32>
    %3 = vector.shape_cast %2 : vector<16xf32> to vector<16x1xf32>
    %4 = math.sqrt %3 : vector<16x1xf32>
    %cst_1 = arith.constant 9.99999993E-9 : f32
    %5 = vector.broadcast %cst_1 : f32 to vector<16x1xf32>
    %6 = arith.addf %4, %5 : vector<16x1xf32>
    %7 = tpu.reciprocal %6 : vector<16x1xf32> -> vector<16x1xf32>
    %8 = vector.broadcast %7 : vector<16x1xf32> to vector<16x16xf32>
    %9 = arith.mulf %0, %8 : vector<16x16xf32>
    %10 = arith.truncf %9 : vector<16x16xf32> to vector<16x16xbf16>
    %c0_2 = arith.constant 0 : index
    %c0_3 = arith.constant 0 : index
    %11 = vector.load %arg2[%c0_2, %c0_3] : memref<16x256xbf16, #tpu.memory_space<vmem>>, vector<16x256xbf16>
    %cst_4 = arith.constant dense<0.000000e+00> : vector<16x256xf32>
    %12 = tpu.matmul %10, %11, %cst_4 {dimension_numbers = #tpu.dot_dimension_numbers<[1], [0], [0], [1], [0, 0, 1, 1], [], []>} : vector<16x16xbf16>, vector<16x256xbf16>, vector<16x256xf32> -> vector<16x256xf32>
    %13 = vector.extract_strided_slice %12 {offsets = [0, 0], sizes = [16, 128], strides = [1, 1]} : vector<16x256xf32> to vector<16x128xf32>
    %cst_5 = arith.constant 0.000000e+00 : f32
    %14 = vector.broadcast %cst_5 : f32 to vector<16x128xf32>
    %15 = arith.maximumf %13, %14 : vector<16x128xf32>
    %16 = vector.extract_strided_slice %12 {offsets = [0, 128], sizes = [16, 128], strides = [1, 1]} : vector<16x256xf32> to vector<16x128xf32>
    %cst_6 = arith.constant 5.000000e-01 : f32
    %17 = vector.broadcast %cst_6 : f32 to vector<16x128xf32>
    %18 = arith.mulf %17, %16 : vector<16x128xf32>
    %19 = math.tanh %18 : vector<16x128xf32>
    %cst_7 = arith.constant 1.000000e+00 : f32
    %20 = vector.broadcast %cst_7 : f32 to vector<16x128xf32>
    %21 = arith.addf %19, %20 : vector<16x128xf32>
    %cst_8 = arith.constant 5.000000e-01 : f32
    %22 = vector.broadcast %cst_8 : f32 to vector<16x128xf32>
    %23 = arith.mulf %22, %21 : vector<16x128xf32>
    %24 = arith.mulf %15, %23 : vector<16x128xf32>
    %c0_9 = arith.constant 0 : index
    %c0_10 = arith.constant 0 : index
    %25 = vector.load %arg3[%c0_9, %c0_10] : memref<16x128xf32, #tpu.memory_space<vmem>>, vector<16x128xf32>
    tpu.vector_store %arg3[%c0_9, %c0_10], %24 {strides = array<i32>} : memref<16x128xf32, #tpu.memory_space<vmem>>, vector<16x128xf32>,
    %c0_11 = arith.constant 0 : index
    %c0_12 = arith.constant 0 : index
    %26 = vector.load %arg4[%c0_11, %c0_12] : memref<16x1xf32, #tpu.memory_space<vmem>>, vector<16x1xf32>
    tpu.vector_store %arg4[%c0_11, %c0_12], %4 {strides = array<i32>} : memref<16x1xf32, #tpu.memory_space<vmem>>, vector<16x1xf32>,
    return
  }
  func.func @transform_0(%arg0: i32) -> (i32, i32) {
    %c0_i32 = arith.constant 0 : i32
    %c0_i32_0 = arith.constant 0 : i32
    return %arg0, %c0_i32 : i32, i32
  }
  func.func @transform_1(%arg0: i32) -> (i32, i32) {
    %c0_i32 = arith.constant 0 : i32
    %c0_i32_0 = arith.constant 0 : i32
    %c0_i32_1 = arith.constant 0 : i32
    return %c0_i32, %c0_i32_0 : i32, i32
  }
  func.func @transform_2(%arg0: i32) -> (i32, i32) {
    %c0_i32 = arith.constant 0 : i32
    %c0_i32_0 = arith.constant 0 : i32
    return %arg0, %c0_i32 : i32, i32
  }
  func.func @transform_3(%arg0: i32) -> (i32, i32) {
    %c0_i32 = arith.constant 0 : i32
    %c0_i32_0 = arith.constant 0 : i32
    return %arg0, %c0_i32 : i32, i32
  }
}

</mosaic_0001>

<llo_original>
// kernel: tpu_custom_call.1
$region0: #{tpu_custom_call.1}
  #allocation0 [shape = 'u32[]', space=smem, size = 0x4, offset = 0x4, fixed_abs, tag = 'smem constant byte address 0x4 - core index']
  #allocation1 [shape = 'u32[144,128]{1,0:T(1,128)}', space=vmem, size = 0x12000, scoped, tag = 'internal scratch']
  %s0 = inlined_call_operand.hbm [shape: f32[16,16], index: 0, kind: input, shape index: {}]
  %s1 = inlined_call_operand.hbm [shape: bf16[16,256], index: 1, kind: input, shape index: {}]
  %s2 = inlined_call_operand.hbm [shape: f32[16,128], index: 2, kind: output, shape index: {0}]
  %s3 = inlined_call_operand.vmem [shape: f32[16,1], index: 3, kind: output, shape index: {1}]
  %4 = xla_tuple %s2, %s3
  %s5 = sld [smem:[#allocation0]]
  $region34: #{tpu_custom_call.1} parent=0
    _
  %s7 = ssub.s32 1, %s5
  %s8 = scalar_select 0, %s7, %s5
  $region1: #{tpu_custom_call.1} parent=0
    #allocation2 [shape = 'u8[8192]{0}', space=vmem, size = 0x2000, scoped, tag = 'input window, operand 0, single buffered']
    #allocation3 [shape = 's32[1]{0}', space=sflag, size = 0x4, scoped, tag = 'scoped memory for tpu_custom_call.1']
    #allocation4 [shape = 's32[1]{0}', space=sflag, size = 0x4, scoped, tag = 'scoped memory for tpu_custom_call.1']
    #allocation5 [shape = 'u8[8192]{0}', space=vmem, size = 0x2000, scoped, tag = 'input window, operand 1, single buffered']
    #allocation6 [shape = 's32[1]{0}', space=sflag, size = 0x4, scoped, tag = 'scoped memory for tpu_custom_call.1']
    #allocation7 [shape = 'u8[8192]{0}', space=vmem, size = 0x2000, scoped, tag = 'output window, operand 0, single buffered']
    %9 = vsyncpa [#allocation3], 0
    %10 = vsyncpa [#allocation6], 0
    %11 = vsyncpa [#allocation4], 0
    // Predicated region
    $region2: #{tpu_custom_call.1} parent=1 // pred_check
      _
    $region3: #{tpu_custom_call.1} parent=1 // pred_check_branch
      %13 = sbr.rel (0) target = $region5
    $region4: #{tpu_custom_call.1} parent=1 // pred_region
      %s15 = ssub.s32 256, 256
      %16 = vsyncadd [#allocation3], %s15
      %s17 = sshll.u32 [#allocation2], 4
      %s18 = int_to_ptr.vmem [resolvable:$true] %s17
      %23 = dma.hbm_to_vmem [thread:$0]  %s0, 256, %s18, [#allocation3], 128, 128, 8
    $region5: #{tpu_custom_call.1} parent=1 // pred_fallthru
      _
    // Predicated region
    $region6: #{tpu_custom_call.1} parent=1 // pred_check
      _
    $region7: #{tpu_custom_call.1} parent=1 // pred_check_branch
      %25 = sbr.rel (0) target = $region9
    $region8: #{tpu_custom_call.1} parent=1 // pred_region
      %s27 = ssub.s32 256, 256
      %28 = vsyncadd [#allocation6], %s27
      %s29 = sshll.u32 [#allocation5], 4
      %s30 = int_to_ptr.vmem [resolvable:$true] %s29
      %35 = dma.hbm_to_vmem [thread:$0]  %s1, 256, %s30, [#allocation6], 128, 128, 8
    $region9: #{tpu_custom_call.1} parent=1 // pred_fallthru
      _
    // Predicated region
    $region10: #{tpu_custom_call.1} parent=1 // pred_check
      _
    $region11: #{tpu_custom_call.1} parent=1 // pred_check_branch
      %37 = sbr.rel (0) target = $region13
    $region12: #{tpu_custom_call.1} parent=1 // pred_region
      %38 = dma.done [#allocation3], 256
    $region13: #{tpu_custom_call.1} parent=1 // pred_fallthru
      _
    // Predicated region
    $region14: #{tpu_custom_call.1} parent=1 // pred_check
      _
    $region15: #{tpu_custom_call.1} parent=1 // pred_check_branch
      %40 = sbr.rel (0) target = $region17
    $region16: #{tpu_custom_call.1} parent=1 // pred_region
      %41 = dma.done [#allocation6], 256
    $region17: #{tpu_custom_call.1} parent=1 // pred_fallthru
      _
    %v43 = vld [vmem:[#allocation2] sm:$0xff]
    %v44 = vld [vmem:[#allocation2 + $0x8] sm:$0xff]
    %v45 = vmul.f32 %v43, %v43
    %v46 = vmul.f32 %v44, %v44
    %vm47 = vcmask 130048
    %v48 = vsel %vm47, %v45, 0.0
    %49 = vadd.xlane.f32.xlu0 %v48
    %v50 = vpop.xlane.xlu0 %49
    %v51 = vsel %vm47, %v46, 0.0
    %52 = vadd.xlane.f32.xlu0 %v51
    %v53 = vpop.xlane.xlu0 %52
    %v54 = vrsqrt.pop %v50
    %v55 = vmul.f32 %v50, %v54
    %vm56 = vcmp.eq.f32.partialorder %v50, inf
    %v57 = vsel %vm56, %v50, %v55
    %vm58 = vcmp.eq.f32.partialorder %v50, 0.0
    %v59 = vand.u32 %v50, 2147483648
    %v60 = vsel %vm58, %v59, %v57
    %v61 = vrsqrt.pop %v53
    %v62 = vmul.f32 %v53, %v61
    %vm63 = vcmp.eq.f32.partialorder %v53, inf
    %v64 = vsel %vm63, %v53, %v62
    %vm65 = vcmp.eq.f32.partialorder %v53, 0.0
    %v66 = vand.u32 %v53, 2147483648
    %v67 = vsel %vm65, %v66, %v64
    %v68 = vadd.f32 %v60, 1e-08
    %v69 = vadd.f32 %v67, 1e-08
    %v70 = vrcp.pop %v68
    %v71 = vrcp.pop %v69
    %v72 = vmul.f32 %v43, %v70
    %v73 = vmul.f32 %v44, %v71
    %v74 = vpack.c.bf16 %v73, %v72
    %v75 = vld [vmem:[#allocation5] sm:$0xff]
    %v76 = vld [vmem:[#allocation5 + $0x8] sm:$0xff]
    %v79 = vunpack.c.l.b16 %v75
    %v80 = vunpack.c.h.b16 %v75
    %v81 = vunpack.c.l.b16 %v76
    %v82 = vunpack.c.h.b16 %v76
    %v83 = vpack.c.b16 %v81, %v79
    %v84 = vpack.c.b16 %v82, %v80
    %v88 = vsel %vm47, %v74, 0
    %90 = vmatprep.subr.bf16.mxu0 %v84
    %91 = vmatpush1.bf16.msra.mxu0 %v83
    %92 = vmatprep.subr.bf16.mxu0 0
    %93 = vmatpush1.bf16.msra.mxu0 0
    %94 = vmatprep.subr.bf16.mxu0 0
    %95 = vmatpush1.bf16.msra.mxu0 0
    %96 = vmatprep.subr.bf16.mxu0 0
    %97 = vmatpush1.bf16.msra.mxu0 0
    %98 = vmatprep.subr.bf16.mxu0 0
    %99 = vmatpush1.bf16.msra.mxu0 0
    %100 = vmatprep.subr.bf16.mxu0 0
    %101 = vmatpush1.bf16.msra.mxu0 0
    %102 = vmatprep.subr.bf16.mxu0 0
    %103 = vmatpush1.bf16.msra.mxu0 0
    %104 = vmatprep.subr.bf16.mxu0 0
    %105 = vmatpush1.bf16.msra.mxu0 0
    %106 = vmatprep.subr.bf16.mxu0 0
    %107 = vmatpush1.bf16.msra.mxu0 0
    %108 = vmatprep.subr.bf16.mxu0 0
    %109 = vmatpush1.bf16.msra.mxu0 0
    %110 = vmatprep.subr.bf16.mxu0 0
    %111 = vmatpush1.bf16.msra.mxu0 0
    %112 = vmatprep.subr.bf16.mxu0 0
    %113 = vmatpush1.bf16.msra.mxu0 0
    %114 = vmatprep.subr.bf16.mxu0 0
    %115 = vmatpush1.bf16.msra.mxu0 0
    %116 = vmatprep.subr.bf16.mxu0 0
    %117 = vmatpush1.bf16.msra.mxu0 0
    %118 = vmatprep.subr.bf16.mxu0 0
    %119 = vmatpush1.bf16.msra.mxu0 0
    %120 = vmatprep.subr.bf16.mxu0 0
    %121 = vmatpush1.bf16.msra.mxu0 0
    %122 = vmatprep.mubr.bf16.mxu0 0
    %123 = vmatmul.mubr.bf16.gmra.mrb[0].mxu0 %v88
    %v124 = vpop.f32.mrb[0].mxu0
    %v125 = vadd.f32 0.0, %v124
    %v126 = vpop.f32.mrb[0].mxu0
    %v127 = vadd.f32 0.0, %v126
    %v128 = vpop.f32.mrb[0].mxu0
    %v129 = vadd.f32 0.0, %v128
    %v130 = vpop.f32.mrb[0].mxu0
    %v131 = vadd.f32 0.0, %v130
    %132 = vdwg.mxu0
    %v133 = vmax.f32 %v125, 0.0
    %v134 = vmax.f32 %v129, 0.0
    %v135 = vmul.f32 %v127, 0.5
    %v136 = vmul.f32 %v131, 0.5
    %v137 = vtanh.pop %v135
    %v138 = vtanh.pop %v136
    %v139 = vadd.f32 %v137, 1.0
    %v140 = vadd.f32 %v138, 1.0
    %v141 = vmul.f32 %v139, 0.5
    %v142 = vmul.f32 %v140, 0.5
    %v143 = vmul.f32 %v133, %v141
    %v144 = vmul.f32 %v134, %v142
    %145 = vst [vmem:[#allocation7] sm:$0xff] %v143
    %146 = vst [vmem:[#allocation7 + $0x8] sm:$0xff] %v144
    %vm147 = vcmask 7168
    %148 = vst.msk [vmem:[%s3] sm:$0xff] %vm147, %v60
    %149 = vst.msk [vmem:[%s3 + $0x8] sm:$0xff] %vm147, %v67
    // Predicated region
    $region18: #{tpu_custom_call.1} parent=1 // pred_check
      _
    $region19: #{tpu_custom_call.1} parent=1 // pred_check_branch
      %151 = sbr.rel (0) target = $region21
    $region20: #{tpu_custom_call.1} parent=1 // pred_region
      %s153 = ssub.s32 256, 256
      %154 = vsyncadd [#allocation4], %s153
      %s155 = sshll.u32 [#allocation7], 4
      %s156 = int_to_ptr.vmem [resolvable:$true] %s155
      %161 = dma.vmem_to_hbm [thread:$0]  %s156, 256, %s2, [#allocation4], 128, 128, 8
    $region21: #{tpu_custom_call.1} parent=1 // pred_fallthru
      _
    // Predicated region
    $region22: #{tpu_custom_call.1} parent=1 // pred_check
      _
    $region23: #{tpu_custom_call.1} parent=1 // pred_check_branch
      %163 = sbr.rel (0) target = $region25
    $region24: #{tpu_custom_call.1} parent=1 // pred_region
      _
    $region25: #{tpu_custom_call.1} parent=1 // pred_fallthru
      _
    // Predicated region
    $region26: #{tpu_custom_call.1} parent=1 // pred_check
      _
    $region27: #{tpu_custom_call.1} parent=1 // pred_check_branch
      %165 = sbr.rel (0) target = $region29
    $region28: #{tpu_custom_call.1} parent=1 // pred_region
      %166 = dma.done [#allocation4], 256
    $region29: #{tpu_custom_call.1} parent=1 // pred_fallthru
      _
    // Predicated region
    $region30: #{tpu_custom_call.1} parent=1 // pred_check
      _
    $region31: #{tpu_custom_call.1} parent=1 // pred_check_branch
      %168 = sbr.rel (0) target = $region33
    $region32: #{tpu_custom_call.1} parent=1 // pred_region
      _
    $region33: #{tpu_custom_call.1} parent=1 // pred_fallthru
      _
    %169 = vsyncpa [#allocation3], 1
    %170 = vsyncpa [#allocation6], 1
    %171 = vsyncpa [#allocation4], 1

</llo_original>
